<compile_context>
chip_gen: v5e
topology: v5e:2x2
jax: 0.10.0
libtpu: 0.0.40
codegen_flags: <defaults>
</compile_context>

<pallas_src>
import jax
import jax.numpy as jnp
from jax.experimental import pallas as pl
from jax.experimental.pallas import tpu as pltpu


# --------------------------------------------------------------------------- #
# Helpers
# --------------------------------------------------------------------------- #
def _round_up(x, m):
    return (x + m - 1) // m * m


def _cdiv(a, b):
    return (a + b - 1) // b


def _vmem_capacity_bytes():
    try:
        return int(pltpu.get_tpu_info().vmem_capacity_bytes)
    except Exception:
        return 128 * 1024 * 1024  # conservative fallback (v5e/v6e class)


def _pick_tile_ff(d_ff_p, target):
    """Largest multiple of 128 that divides d_ff_p and is <= target."""
    target = max(128, min(target, d_ff_p))
    start = target - target % 128
    for t in range(start, 127, -128):
        if d_ff_p % t == 0:
            return t
    return 128  # d_ff_p is always a multiple of 128


def _vmem_bytes(tile_m, tile_ff, d_model, in_size, out_size):
    return (
        2 * tile_m * d_model * in_size        # x blocks (double-buffered)
        + tile_m * d_model * 2                # resident bf16 x scratch
        + 2 * d_model * tile_ff * 2           # w1t blocks (bf16)
        + 2 * tile_ff * 4                     # b1 blocks (f32)
        + 2 * tile_ff * d_model * 2           # w2t blocks (bf16)
        + 2 * d_model * 4                     # b2 blocks (f32)
        + 2 * tile_m * d_model * out_size     # out blocks
        + tile_m * d_model * 4                # f32 accumulator
        + 2 * tile_m * tile_ff * 4            # h / silu intermediates
    )


# --------------------------------------------------------------------------- #
# One-time weight preparation (outside the per-call hot path)
# --------------------------------------------------------------------------- #
def prepare_params(w1, b1, w2, b2):
    """Cast + transpose + d_ff-pad the PyTorch-layout weights once.

    w1: (d_ff, d_model), b1: (d_ff,), w2: (d_model, d_ff), b2: (d_model,)
    Returns (w1t, b1p, w2t, b2p) with d_ff zero-padded to a multiple of 128:
      w1t: (d_model, d_ff_p) bf16, b1p: (1, d_ff_p) f32,
      w2t: (d_ff_p, d_model) bf16, b2p: (1, d_model) f32.
    Zero padding is exact: silu(0 + 0) == 0 and the padded w2 rows are zero.
    """
    d_ff, d_model = w1.shape
    d_ff_p = _round_up(d_ff, 128)

    w1t = jnp.zeros((d_model, d_ff_p), jnp.bfloat16)
    w1t = w1t.at[:, :d_ff].set(w1.T.astype(jnp.bfloat16))
    w2t = jnp.zeros((d_ff_p, d_model), jnp.bfloat16)
    w2t = w2t.at[:d_ff, :].set(w2.T.astype(jnp.bfloat16))
    b1p = jnp.zeros((1, d_ff_p), jnp.float32)
    b1p = b1p.at[:, :d_ff].set(b1.reshape(1, d_ff).astype(jnp.float32))
    b2p = b2.reshape(1, d_model).astype(jnp.float32)
    return w1t, b1p, w2t, b2p


# --------------------------------------------------------------------------- #
# Kernel
# --------------------------------------------------------------------------- #
def ffn_kernel(x_ref, w1_ref, b1_ref, w2_ref, b2_ref, o_ref, acc_ref, xbf_ref):
    # x_ref  : (tile_m, d_model)   input dtype (cast once per M tile)
    # w1_ref : (d_model, tile_ff)  bf16 (pre-transposed w1 slice)
    # b1_ref : (1, tile_ff)        f32
    # w2_ref : (tile_ff, d_model)  bf16 (pre-transposed w2 slice)
    # b2_ref : (1, d_model)        f32
    # o_ref  : (tile_m, d_model)   out dtype
    # acc_ref: (tile_m, d_model)   f32 accumulator, resident across ff axis
    # xbf_ref: (tile_m, d_model)   bf16 copy of x, resident across ff axis
    ff = pl.program_id(1)

    @pl.when(ff == 0)
    def _init():
        acc_ref[...] = jnp.zeros_like(acc_ref)
        xbf_ref[...] = x_ref[...].astype(jnp.bfloat16)

    # h = x @ w1t_tile  -> (tile_m, tile_ff), MXU with f32 accumulation
    h = jnp.dot(xbf_ref[...], w1_ref[...], preferred_element_type=jnp.float32)
    h = h + b1_ref[...]                 # bias in f32
    h = h * jax.nn.sigmoid(h)           # SiLU in f32 (sigmoid -> EUP)

    # partial y += silu(h) @ w2t_tile -> (tile_m, d_model)
    acc_ref[...] += jnp.dot(h.astype(jnp.bfloat16), w2_ref[...],
                            preferred_element_type=jnp.float32)

    @pl.when(ff == pl.num_programs(1) - 1)
    def _finalize():
        o_ref[...] = (acc_ref[...] + b2_ref[...]).astype(o_ref.dtype)


# --------------------------------------------------------------------------- #
# Wrapper
# --------------------------------------------------------------------------- #
def feed_forward(x, w1t, b1p, w2t, b2p, *, tile_m=None, tile_ff=None):
    """x: (B, S, d_model); prepared params from prepare_params()."""
    B, S, d_model = x.shape
    d_ff_p = w1t.shape[1]
    M = B * S
    out_dtype = x.dtype
    in_size = jnp.dtype(x.dtype).itemsize
    out_size = jnp.dtype(out_dtype).itemsize

    # --- device-aware tile targets ------------------------------------------
    vmem_cap = _vmem_capacity_bytes()
    small_vmem = vmem_cap <= 64 * 1024 * 1024        # v7x-class TensorCore
    tile_m_t = tile_m if tile_m is not None else (768 if small_vmem else 1024)
    tile_ff_t = tile_ff if tile_ff is not None else (256 if small_vmem else 512)

    tile_ff = _pick_tile_ff(d_ff_p, tile_ff_t)
    n_ff = d_ff_p // tile_ff

    tile_m = min(tile_m_t, _round_up(M, 8))
    # v7x megacore guard: keep >= 2 row tiles on the 'parallel' axis when the
    # problem is big enough to afford the halved weight-reuse.
    if small_vmem and _cdiv(M, tile_m) < 2 and M > 512:
        tile_m = max(256, _round_up(_cdiv(M, 2), 256))

    # --- fit the block budget inside physical VMEM ---------------------------
    budget = vmem_cap - vmem_cap // 8                # leave ~12.5% headroom
    while _vmem_bytes(tile_m, tile_ff, d_model, in_size, out_size) > budget \
            and tile_m > 256:
        tile_m = max(256, tile_m - 256)
    while _vmem_bytes(tile_m, tile_ff, d_model, in_size, out_size) > budget \
            and tile_ff > 128:
        tile_ff = _pick_tile_ff(d_ff_p, tile_ff // 2)
        n_ff = d_ff_p // tile_ff

    n_m = _cdiv(M, tile_m)
    grid = (n_m, n_ff)

    vmem_est = _vmem_bytes(tile_m, tile_ff, d_model, in_size, out_size)
    vmem_limit = int(min(max(vmem_est * 1.15 + (2 << 20), 32 << 20), budget))

    # CostEstimate: weights are re-streamed once per M tile.
    w_bytes = (w1t.size + w2t.size) * 2
    cost = pl.CostEstimate(
        flops=int(4 * M * d_model * d_ff_p),
        transcendentals=int(M * d_ff_p),
        bytes_accessed=int(
            M * d_model * in_size                 # x (read once)
            + n_m * w_bytes                       # w1t + w2t, re-streamed
            + b1p.size * 4 + b2p.size * 4
            + M * d_model * out_size),            # output
    )

    x2d = x.reshape(M, d_model)                   # view-style reshape, no pad

    out2d = pl.pallas_call(
        ffn_kernel,
        out_shape=jax.ShapeDtypeStruct((M, d_model), out_dtype),
        grid_spec=pltpu.PrefetchScalarGridSpec(
            num_scalar_prefetch=0,
            grid=grid,
            in_specs=[
                pl.BlockSpec((tile_m, d_model), lambda i, ff: (i, 0)),    # x
                pl.BlockSpec((d_model, tile_ff), lambda i, ff: (0, ff)),  # w1t
                pl.BlockSpec((1, tile_ff), lambda i, ff: (0, ff)),        # b1
                pl.BlockSpec((tile_ff, d_model), lambda i, ff: (ff, 0)),  # w2t
                pl.BlockSpec((1, d_model), lambda i, ff: (0, 0)),         # b2
            ],
            out_specs=pl.BlockSpec((tile_m, d_model), lambda i, ff: (i, 0)),
            scratch_shapes=[
                pltpu.VMEM((tile_m, d_model), jnp.float32),    # f32 accumulator
                pltpu.VMEM((tile_m, d_model), jnp.bfloat16),   # bf16 x copy
            ],
        ),
        compiler_params=pltpu.CompilerParams(
            dimension_semantics=("parallel", "arbitrary"),
            vmem_limit_bytes=vmem_limit,
        ),
        cost_estimate=cost,
    )(x2d, w1t, b1p, w2t, b2p)

    return out2d.reshape(B, S, d_model)


# --------------------------------------------------------------------------- #
# Reference & test
# --------------------------------------------------------------------------- #
def _init_linear(key, out_features, in_features, dtype=jnp.float32):
    # Deterministic init mimicking nn.Linear (uniform +/- 1/sqrt(fan_in)).
    kw, kb = jax.random.split(key)
    bound = 1.0 / (in_features ** 0.5)
    w = jax.random.uniform(kw, (out_features, in_features), dtype,
                           minval=-bound, maxval=bound)
    b = jax.random.uniform(kb, (out_features,), dtype,
                           minval=-bound, maxval=bound)
    return w, b


def _reference(x, w1, b1, w2, b2):
    # Pure-JAX reference with the same bf16 operand rounding as the kernel
    # (matmul accumulation in f32).
    xb = x.astype(jnp.bfloat16).astype(jnp.float32)
    w1b = w1.astype(jnp.bfloat16).astype(jnp.float32)
    w2b = w2.astype(jnp.bfloat16).astype(jnp.float32)
    h = xb @ w1b.T + b1
    h = h * jax.nn.sigmoid(h)
    return h.astype(jnp.bfloat16).astype(jnp.float32) @ w2b.T + b2


if __name__ == "__main__":
    batch, seq, d_model, d_ff = 2, 8, 32, 64

    key = jax.random.PRNGKey(0)
    kx, k1, k2 = jax.random.split(key, 3)

    x = jax.random.normal(kx, (batch, seq, d_model), jnp.float32)
    w1, b1 = _init_linear(k1, d_ff, d_model)      # (d_ff, d_model)
    w2, b2 = _init_linear(k2, d_model, d_ff)      # (d_model, d_ff)

    # One-time weight preparation (outside the hot path).
    params = prepare_params(w1, b1, w2, b2)

    out = feed_forward(x, *params)
    out = jax.block_until_ready(out)
    ref = _reference(x, w1, b1, w2, b2)
    assert out.shape == (batch, seq, d_model)
    assert jnp.allclose(out, ref, atol=1e-2, rtol=1e-2), \
        float(jnp.max(jnp.abs(out - ref)))

    # Also exercise the ragged-M path (M = 14, partial last row tile).
    x_odd = jax.random.normal(kx, (2, 7, d_model), jnp.float32)
    out_odd = jax.block_until_ready(feed_forward(x_odd, *params))
    ref_odd = _reference(x_odd, w1, b1, w2, b2)
    assert out_odd.shape == (2, 7, d_model)
    assert jnp.allclose(out_odd, ref_odd, atol=1e-2, rtol=1e-2), \
        float(jnp.max(jnp.abs(out_odd - ref_odd)))

    print("KERNEL_OK")
</pallas_src>

<mosaic_0001>
module attributes {stable_mosaic.version = 11 : i64} {
  func.func @ffn_kernel(%arg0: i32, %arg1: i32, %arg2: memref<16x32xf32, #tpu.memory_space<vmem>>, %arg3: memref<32x128xbf16, #tpu.memory_space<vmem>>, %arg4: memref<1x128xf32, #tpu.memory_space<vmem>>, %arg5: memref<128x32xbf16, #tpu.memory_space<vmem>>, %arg6: memref<1x32xf32, #tpu.memory_space<vmem>>, %arg7: memref<16x32xf32, #tpu.memory_space<vmem>>, %arg8: memref<16x32xf32, #tpu.memory_space<vmem>>, %arg9: memref<16x32xbf16, #tpu.memory_space<vmem>>) attributes {dimension_semantics = [#tpu.dimension_semantics<parallel>, #tpu.dimension_semantics<arbitrary>], iteration_bounds = array<i64: 1, 1>, scalar_prefetch = 0 : i64, scratch_operands = 2 : i64, tpu.core_type = #tpu.core_type<tc>, window_params = [{transform_indices = @transform_0, window_bounds = array<i64: 16, 32>}, {transform_indices = @transform_1, window_bounds = array<i64: 32, 128>}, {transform_indices = @transform_2, window_bounds = array<i64: 1, 128>}, {transform_indices = @transform_3, window_bounds = array<i64: 128, 32>}, {pipeline_mode = #tpu.pipeline_mode<synchronous>, transform_indices = @transform_4, window_bounds = array<i64: 1, 32>}, {transform_indices = @transform_5, window_bounds = array<i64: 16, 32>}]} {
    %c0_i32 = arith.constant 0 : i32
    %0 = arith.cmpi eq, %arg1, %c0_i32 : i32
    %1 = arith.extui %0 : i1 to i32
    %c0_i32_0 = arith.constant 0 : i32
    %2 = arith.cmpi ne, %1, %c0_i32_0 : i32
    scf.if %2 {
      %cst_16 = arith.constant 0.000000e+00 : f32
      %24 = vector.broadcast %cst_16 : f32 to vector<16x32xf32>
      %c0_17 = arith.constant 0 : index
      %c0_18 = arith.constant 0 : index
      %25 = vector.load %arg8[%c0_17, %c0_18] : memref<16x32xf32, #tpu.memory_space<vmem>>, vector<16x32xf32>
      tpu.vector_store %arg8[%c0_17, %c0_18], %24 {strides = array<i32>} : memref<16x32xf32, #tpu.memory_space<vmem>>, vector<16x32xf32>,
      %c0_19 = arith.constant 0 : index
      %c0_20 = arith.constant 0 : index
      %26 = vector.load %arg2[%c0_19, %c0_20] : memref<16x32xf32, #tpu.memory_space<vmem>>, vector<16x32xf32>
      %27 = arith.truncf %26 : vector<16x32xf32> to vector<16x32xbf16>
      %c0_21 = arith.constant 0 : index
      %c0_22 = arith.constant 0 : index
      %28 = vector.load %arg9[%c0_21, %c0_22] : memref<16x32xbf16, #tpu.memory_space<vmem>>, vector<16x32xbf16>
      tpu.vector_store %arg9[%c0_21, %c0_22], %27 {strides = array<i32>} : memref<16x32xbf16, #tpu.memory_space<vmem>>, vector<16x32xbf16>,
    } else {
    }
    %c0 = arith.constant 0 : index
    %c0_1 = arith.constant 0 : index
    %3 = vector.load %arg9[%c0, %c0_1] : memref<16x32xbf16, #tpu.memory_space<vmem>>, vector<16x32xbf16>
    %c0_2 = arith.constant 0 : index
    %c0_3 = arith.constant 0 : index
    %4 = vector.load %arg3[%c0_2, %c0_3] : memref<32x128xbf16, #tpu.memory_space<vmem>>, vector<32x128xbf16>
    %cst = arith.constant dense<0.000000e+00> : vector<16x128xf32>
    %5 = tpu.matmul %3, %4, %cst {dimension_numbers = #tpu.dot_dimension_numbers<[1], [0], [0], [1], [0, 0, 1, 1], [], []>} : vector<16x32xbf16>, vector<32x128xbf16>, vector<16x128xf32> -> vector<16x128xf32>
    %c0_4 = arith.constant 0 : index
    %c0_5 = arith.constant 0 : index
    %6 = vector.load %arg4[%c0_4, %c0_5] : memref<1x128xf32, #tpu.memory_space<vmem>>, vector<1x128xf32>
    %7 = vector.broadcast %6 : vector<1x128xf32> to vector<16x128xf32>
    %8 = arith.addf %5, %7 : vector<16x128xf32>
    %9 = arith.negf %8 : vector<16x128xf32>
    %10 = math.exp %9 : vector<16x128xf32>
    %cst_6 = arith.constant 1.000000e+00 : f32
    %11 = vector.broadcast %cst_6 : f32 to vector<16x128xf32>
    %12 = arith.addf %11, %10 : vector<16x128xf32>
    %13 = arith.divf %11, %12 : vector<16x128xf32>
    %14 = arith.mulf %8, %13 : vector<16x128xf32>
    %c0_7 = arith.constant 0 : index
    %c0_8 = arith.constant 0 : index
    %15 = vector.load %arg8[%c0_7, %c0_8] : memref<16x32xf32, #tpu.memory_space<vmem>>, vector<16x32xf32>
    %16 = arith.truncf %14 : vector<16x128xf32> to vector<16x128xbf16>
    %c0_9 = arith.constant 0 : index
    %c0_10 = arith.constant 0 : index
    %17 = vector.load %arg5[%c0_9, %c0_10] : memref<128x32xbf16, #tpu.memory_space<vmem>>, vector<128x32xbf16>
    %cst_11 = arith.constant dense<0.000000e+00> : vector<16x32xf32>
    %18 = tpu.matmul %16, %17, %cst_11 {dimension_numbers = #tpu.dot_dimension_numbers<[1], [0], [0], [1], [0, 0, 1, 1], [], []>} : vector<16x128xbf16>, vector<128x32xbf16>, vector<16x32xf32> -> vector<16x32xf32>
    %19 = arith.addf %15, %18 : vector<16x32xf32>
    %c0_12 = arith.constant 0 : index
    %c0_13 = arith.constant 0 : index
    %20 = vector.load %arg8[%c0_12, %c0_13] : memref<16x32xf32, #tpu.memory_space<vmem>>, vector<16x32xf32>
    tpu.vector_store %arg8[%c0_12, %c0_13], %19 {strides = array<i32>} : memref<16x32xf32, #tpu.memory_space<vmem>>, vector<16x32xf32>,
    %c0_i32_14 = arith.constant 0 : i32
    %21 = arith.cmpi eq, %arg1, %c0_i32_14 : i32
    %22 = arith.extui %21 : i1 to i32
    %c0_i32_15 = arith.constant 0 : i32
    %23 = arith.cmpi ne, %22, %c0_i32_15 : i32
    scf.if %23 {
      %c0_16 = arith.constant 0 : index
      %c0_17 = arith.constant 0 : index
      %24 = vector.load %arg8[%c0_16, %c0_17] : memref<16x32xf32, #tpu.memory_space<vmem>>, vector<16x32xf32>
      %c0_18 = arith.constant 0 : index
      %c0_19 = arith.constant 0 : index
      %25 = vector.load %arg6[%c0_18, %c0_19] : memref<1x32xf32, #tpu.memory_space<vmem>>, vector<1x32xf32>
      %26 = vector.broadcast %25 : vector<1x32xf32> to vector<16x32xf32>
      %27 = arith.addf %24, %26 : vector<16x32xf32>
      %c0_20 = arith.constant 0 : index
      %c0_21 = arith.constant 0 : index
      %28 = vector.load %arg7[%c0_20, %c0_21] : memref<16x32xf32, #tpu.memory_space<vmem>>, vector<16x32xf32>
      tpu.vector_store %arg7[%c0_20, %c0_21], %27 {strides = array<i32>} : memref<16x32xf32, #tpu.memory_space<vmem>>, vector<16x32xf32>,
    } else {
    }
    return
  }
  func.func @transform_0(%arg0: i32, %arg1: i32) -> (i32, i32) {
    %c0_i32 = arith.constant 0 : i32
    %c0_i32_0 = arith.constant 0 : i32
    return %arg0, %c0_i32 : i32, i32
  }
  func.func @transform_1(%arg0: i32, %arg1: i32) -> (i32, i32) {
    %c0_i32 = arith.constant 0 : i32
    %c0_i32_0 = arith.constant 0 : i32
    return %c0_i32, %arg1 : i32, i32
  }
  func.func @transform_2(%arg0: i32, %arg1: i32) -> (i32, i32) {
    %c0_i32 = arith.constant 0 : i32
    %c0_i32_0 = arith.constant 0 : i32
    return %c0_i32, %arg1 : i32, i32
  }
  func.func @transform_3(%arg0: i32, %arg1: i32) -> (i32, i32) {
    %c0_i32 = arith.constant 0 : i32
    %c0_i32_0 = arith.constant 0 : i32
    return %arg1, %c0_i32 : i32, i32
  }
  func.func @transform_4(%arg0: i32, %arg1: i32) -> (i32, i32) {
    %c0_i32 = arith.constant 0 : i32
    %c0_i32_0 = arith.constant 0 : i32
    %c0_i32_1 = arith.constant 0 : i32
    return %c0_i32, %c0_i32_0 : i32, i32
  }
  func.func @transform_5(%arg0: i32, %arg1: i32) -> (i32, i32) {
    %c0_i32 = arith.constant 0 : i32
    %c0_i32_0 = arith.constant 0 : i32
    return %arg0, %c0_i32 : i32, i32
  }
}

</mosaic_0001>

<llo_original>
// kernel: tpu_custom_call.1
$region0: #{tpu_custom_call.1}
  #allocation0 [shape = 'u32[]', space=smem, size = 0x4, offset = 0x4, fixed_abs, tag = 'smem constant byte address 0x4 - core index']
  #allocation1 [shape = 'u32[72,128]{1,0:T(1,128)}', space=vmem, size = 0x9000, scoped, tag = 'internal scratch']
  #allocation2 [shape = 'f32[16,32]{1,0:T(8,128)}', space=vmem, size = 0x2000, scoped, tag = 'scratch operand']
  #allocation3 [shape = 'bf16[16,32]{1,0:T(8,128)(2,1)}', space=vmem, size = 0x1000, scoped, tag = 'scratch operand']
  %s0 = inlined_call_operand.vmem [shape: f32[16,32], index: 0, kind: input, shape index: {}]
  %s1 = inlined_call_operand.vmem [shape: bf16[32,128], index: 1, kind: input, shape index: {}]
  %s2 = inlined_call_operand.vmem [shape: f32[1,128], index: 2, kind: input, shape index: {}]
  %s3 = inlined_call_operand.vmem [shape: bf16[128,32], index: 3, kind: input, shape index: {}]
  %s4 = inlined_call_operand.vmem [shape: f32[1,32], index: 4, kind: input, shape index: {}]
  %s5 = inlined_call_operand.hbm [shape: f32[16,32], index: 5, kind: output, shape index: {}]
  %s6 = sld [smem:[#allocation0]]
  $region38: #{tpu_custom_call.1} parent=0
    _
  %s8 = ssub.s32 1, %s6
  %s9 = scalar_select 0, %s8, %s6
  $region1: #{tpu_custom_call.1} parent=0
    #allocation4 [shape = 'u8[8192]{0}', space=vmem, size = 0x2000, scoped, tag = 'output window, operand 0, single buffered']
    #allocation5 [shape = 's32[1]{0}', space=sflag, size = 0x4, scoped, tag = 'scoped memory for tpu_custom_call.1']
    %10 = vsyncpa [#allocation5], 0
    // Predicated region
    $region2: #{tpu_custom_call.1} parent=1 // pred_check
      _
    $region3: #{tpu_custom_call.1} parent=1 // pred_check_branch
      %12 = sbr.rel (0) target = $region5
    $region4: #{tpu_custom_call.1} parent=1 // pred_region
      _
    $region5: #{tpu_custom_call.1} parent=1 // pred_fallthru
      _
    // Predicated region
    $region6: #{tpu_custom_call.1} parent=1 // pred_check
      _
    $region7: #{tpu_custom_call.1} parent=1 // pred_check_branch
      %14 = sbr.rel (0) target = $region9
    $region8: #{tpu_custom_call.1} parent=1 // pred_region
      _
    $region9: #{tpu_custom_call.1} parent=1 // pred_fallthru
      _
    // Predicated region
    $region10: #{tpu_custom_call.1} parent=1 // pred_check
      _
    $region11: #{tpu_custom_call.1} parent=1 // pred_check_branch
      %16 = sbr.rel (0) target = $region13
    $region12: #{tpu_custom_call.1} parent=1 // pred_region
      _
    $region13: #{tpu_custom_call.1} parent=1 // pred_fallthru
      _
    // Predicated region
    $region14: #{tpu_custom_call.1} parent=1 // pred_check
      _
    $region15: #{tpu_custom_call.1} parent=1 // pred_check_branch
      %18 = sbr.rel (0) target = $region17
    $region16: #{tpu_custom_call.1} parent=1 // pred_region
      _
    $region17: #{tpu_custom_call.1} parent=1 // pred_fallthru
      _
    // Predicated region
    $region18: #{tpu_custom_call.1} parent=1 // pred_check
      _
    $region19: #{tpu_custom_call.1} parent=1 // pred_check_branch
      %20 = sbr.rel (0) target = $region21
    $region20: #{tpu_custom_call.1} parent=1 // pred_region
      _
    $region21: #{tpu_custom_call.1} parent=1 // pred_fallthru
      _
    %p22 = scmp.eq.s32.totalorder 0, 0
    // Predicated region
    $region22: #{tpu_custom_call.1} parent=1 // pred_check
      %p23 = pneg %p22
    $region23: #{tpu_custom_call.1} parent=1 // pred_check_branch
      %25 = sbr.rel (%p23) target = $region25
    $region24: #{tpu_custom_call.1} parent=1 // pred_region
      %vm26 = vcmask 261120
      %27 = vst.msk [vmem:[#allocation2] sm:$0xff] %vm26, 0.0
      %28 = vst.msk [vmem:[#allocation2 + $0x8] sm:$0xff] %vm26, 0.0
      %v29 = vld [vmem:[%s0] sm:$0xff]
      %v30 = vld [vmem:[%s0 + $0x8] sm:$0xff]
      %v31 = vpack.c.bf16 %v29, %v29
      %v32 = vpack.c.bf16 %v30, %v30
      %vm33 = vcmask 257024
      %34 = vst.msk [vmem:[#allocation3] sm:$0xf] %vm33, %v31
      %35 = vst.msk [vmem:[#allocation3 + $0x4] sm:$0xf] %vm33, %v32
    $region25: #{tpu_custom_call.1} parent=1 // pred_fallthru
      _
    %v36 = vld [vmem:[#allocation3] sm:$0xf]
    %v37 = vld [vmem:[#allocation3 + $0x4] sm:$0xf]
    %v38 = vld [vmem:[%s1] sm:$0xf]
    %v39 = vld [vmem:[%s1 + $0x4] sm:$0xf]
    %v40 = vld [vmem:[%s1 + $0x8] sm:$0xf]
    %v41 = vld [vmem:[%s1 + $0xc] sm:$0xf]
    %v42 = vld [vmem:[%s2] sm:$0x1]
    %v44 = vperm.slane %v42, 0
    %v48 = vunpack.c.l.b16 %v36
    %v49 = vunpack.c.l.b16 %v37
    %v50 = vpack.c.b16 %v49, %v48
    %v55 = vunpack.c.l.b16 %v38
    %v56 = vunpack.c.l.b16 %v39
    %v57 = vunpack.c.l.b16 %v40
    %v58 = vunpack.c.l.b16 %v41
    %v59 = vpack.c.b16 %v56, %v55
    %v60 = vpack.c.b16 %v58, %v57
    %vm63 = vcmask 261120
    %v65 = vsel %vm63, %v50, 0
    %67 = vmatpush.bf16.msra.mxu0 0
    %68 = vmatpush.bf16.msra.mxu0 0
    %69 = vmatpush.bf16.msra.mxu0 0
    %70 = vmatpush.bf16.msra.mxu0 0
    %71 = vmatpush.bf16.msra.mxu0 0
    %72 = vmatpush.bf16.msra.mxu0 0
    %73 = vmatpush.bf16.msra.mxu0 %v60
    %74 = vmatpush.bf16.msra.mxu0 %v59
    %75 = vmatmul.bf16.gmra.mxu0 %v65
    %v76 = vpop.f32.mrf.mxu0
    %v77 = vadd.f32 %v44, %v76
    %v78 = vpop.f32.mrf.mxu0
    %v79 = vadd.f32 %v44, %v78
    %80 = vdwg.mxu0
    %v81 = vxor.u32 %v77, 2147483648
    %v82 = vxor.u32 %v79, 2147483648
    %v83 = vmul.f32 %v81, 1.442695
    %v84 = vpow.pop %v83
    %v85 = vmul.f32 %v82, 1.442695
    %v86 = vpow.pop %v85
    %v87 = vadd.f32 %v84, 1.0
    %v88 = vadd.f32 %v86, 1.0
    %v89 = vrcp.pop %v87
    %v90 = vmul.f32 %v87, %v89
    %v91 = vsub.f32 1.0, %v90
    %v92 = vmul.f32 %v89, %v91
    %v93 = vadd.f32 %v89, %v92
    %vm94 = vweird.f32 %v87
    %vm95 = vweird.f32 %v89
    %vm96 = vmor %vm94, %vm95
    %v97 = vsel %vm96, %v89, %v93
    %v98 = vand.u32 2147483647, %v87
    %vm99 = vcmp.eq.f32.partialorder %v98, 8.507059e+37
    %v100 = vand.u32 %v87, 2147483648
    %v101 = vor.u32 1.1754944e-38, %v100
    %v102 = vsel %vm99, %v101, %v97
    %v103 = vmul.f32 1.0, %v102
    %v104 = vrcp.pop %v88
    %v105 = vmul.f32 %v88, %v104
    %v106 = vsub.f32 1.0, %v105
    %v107 = vmul.f32 %v104, %v106
    %v108 = vadd.f32 %v104, %v107
    %vm109 = vweird.f32 %v88
    %vm110 = vweird.f32 %v104
    %vm111 = vmor %vm109, %vm110
    %v112 = vsel %vm111, %v104, %v108
    %v113 = vand.u32 2147483647, %v88
    %vm114 = vcmp.eq.f32.partialorder %v113, 8.507059e+37
    %v115 = vand.u32 %v88, 2147483648
    %v116 = vor.u32 1.1754944e-38, %v115
    %v117 = vsel %vm114, %v116, %v112
    %v118 = vmul.f32 1.0, %v117
    %v119 = vmul.f32 %v77, %v103
    %v120 = vmul.f32 %v79, %v118
    %v121 = vld [vmem:[#allocation2] sm:$0xff]
    %v122 = vld [vmem:[#allocation2 + $0x8] sm:$0xff]
    %v123 = vpack.c.bf16 %v120, %v119
    %v124 = vld [vmem:[%s3] sm:$0xf]
    %v125 = vld [vmem:[%s3 + $0x4] sm:$0xf]
    %v126 = vld [vmem:[%s3 + $0x8] sm:$0xf]
    %v127 = vld [vmem:[%s3 + $0xc] sm:$0xf]
    %v128 = vld [vmem:[%s3 + $0x10] sm:$0xf]
    %v129 = vld [vmem:[%s3 + $0x14] sm:$0xf]
    %v130 = vld [vmem:[%s3 + $0x18] sm:$0xf]
    %v131 = vld [vmem:[%s3 + $0x1c] sm:$0xf]
    %v132 = vld [vmem:[%s3 + $0x20] sm:$0xf]
    %v133 = vld [vmem:[%s3 + $0x24] sm:$0xf]
    %v134 = vld [vmem:[%s3 + $0x28] sm:$0xf]
    %v135 = vld [vmem:[%s3 + $0x2c] sm:$0xf]
    %v136 = vld [vmem:[%s3 + $0x30] sm:$0xf]
    %v137 = vld [vmem:[%s3 + $0x34] sm:$0xf]
    %v138 = vld [vmem:[%s3 + $0x38] sm:$0xf]
    %v139 = vld [vmem:[%s3 + $0x3c] sm:$0xf]
    %v156 = vunpack.c.l.b16 %v124
    %v157 = vunpack.c.l.b16 %v125
    %v158 = vunpack.c.l.b16 %v126
    %v159 = vunpack.c.l.b16 %v127
    %v160 = vunpack.c.l.b16 %v128
    %v161 = vunpack.c.l.b16 %v129
    %v162 = vunpack.c.l.b16 %v130
    %v163 = vunpack.c.l.b16 %v131
    %v164 = vunpack.c.l.b16 %v132
    %v165 = vunpack.c.l.b16 %v133
    %v166 = vunpack.c.l.b16 %v134
    %v167 = vunpack.c.l.b16 %v135
    %v168 = vunpack.c.l.b16 %v136
    %v169 = vunpack.c.l.b16 %v137
    %v170 = vunpack.c.l.b16 %v138
    %v171 = vunpack.c.l.b16 %v139
    %v172 = vpack.c.b16 %v157, %v156
    %v173 = vpack.c.b16 %v159, %v158
    %v174 = vpack.c.b16 %v161, %v160
    %v175 = vpack.c.b16 %v163, %v162
    %v176 = vpack.c.b16 %v165, %v164
    %v177 = vpack.c.b16 %v167, %v166
    %v178 = vpack.c.b16 %v169, %v168
    %v179 = vpack.c.b16 %v171, %v170
    %188 = vmatpush.bf16.msra.mxu0 %v179
    %189 = vmatpush.bf16.msra.mxu0 %v178
    %190 = vmatpush.bf16.msra.mxu0 %v177
    %191 = vmatpush.bf16.msra.mxu0 %v176
    %192 = vmatpush.bf16.msra.mxu0 %v175
    %193 = vmatpush.bf16.msra.mxu0 %v174
    %194 = vmatpush.bf16.msra.mxu0 %v173
    %195 = vmatpush.bf16.msra.mxu0 %v172
    %196 = vmatmul.bf16.gmra.mxu0 %v123
    %v197 = vpop.f32.mrf.mxu0
    %v198 = vadd.f32 0.0, %v197
    %v199 = vpop.f32.mrf.mxu0
    %v200 = vadd.f32 0.0, %v199
    %201 = vdwg.mxu0
    %v202 = vadd.f32 %v121, %v198
    %v203 = vadd.f32 %v122, %v200
    %204 = vst.msk [vmem:[#allocation2] sm:$0xff] %vm63, %v202
    %205 = vst.msk [vmem:[#allocation2 + $0x8] sm:$0xff] %vm63, %v203
    // Predicated region
    $region26: #{tpu_custom_call.1} parent=1 // pred_check
      %p206 = pneg %p22
    $region27: #{tpu_custom_call.1} parent=1 // pred_check_branch
      %208 = sbr.rel (%p206) target = $region29
    $region28: #{tpu_custom_call.1} parent=1 // pred_region
      %v209 = vld [vmem:[#allocation2] sm:$0xff]
      %v210 = vld [vmem:[#allocation2 + $0x8] sm:$0xff]
      %v211 = vld [vmem:[%s4] sm:$0x1]
      %v213 = vperm.slane %v211, 0
      %v215 = vadd.f32 %v209, %v213
      %v216 = vadd.f32 %v210, %v213
      %217 = vst.msk [vmem:[#allocation4] sm:$0xff] %vm63, %v215
      %218 = vst.msk [vmem:[#allocation4 + $0x8] sm:$0xff] %vm63, %v216
    $region29: #{tpu_custom_call.1} parent=1 // pred_fallthru
      _
    // Predicated region
    $region30: #{tpu_custom_call.1} parent=1 // pred_check
      _
    $region31: #{tpu_custom_call.1} parent=1 // pred_check_branch
      %220 = sbr.rel (0) target = $region33
    $region32: #{tpu_custom_call.1} parent=1 // pred_region
      %222 = vsyncadd [#allocation5], 0
      %s223 = sshll.u32 [#allocation4], 4
      %s224 = int_to_ptr.vmem [resolvable:$true] %s223
      %s225 = sshll.u32 %s5, 4
      %s226 = int_to_ptr.hbm [resolvable:$true] %s225
      %231 = dma.vmem_to_hbm [thread:$0]  %s224, 256, %s226, [#allocation5], 128, 128, 8
    $region33: #{tpu_custom_call.1} parent=1 // pred_fallthru
      _
    // Predicated region
    $region34: #{tpu_custom_call.1} parent=1 // pred_check
      _
    $region35: #{tpu_custom_call.1} parent=1 // pred_check_branch
      %233 = sbr.rel (0) target = $region37
    $region36: #{tpu_custom_call.1} parent=1 // pred_region
      %235 = dma.done [#allocation5], 256
    $region37: #{tpu_custom_call.1} parent=1 // pred_fallthru
      _
    %236 = vsyncpa [#allocation5], 1

</llo_original>
